<compile_context>
chip_gen: v7x
topology: tpu7x:2x2x1
jax: 0.10.0
libtpu: 0.0.40
codegen_flags: <defaults>
</compile_context>

<pallas_src>
import math

import jax
import jax.numpy as jnp
from jax.experimental import pallas as pl
from jax.experimental.pallas import tpu as pltpu


def _complex_linear_kernel(x_ref, w_ref, bias_ref, out_ref, acc_ref):
    # x_ref   : (2, tm, tk)   [0] = real rows, [1] = imag rows
    # w_ref   : (2, tk, tn)   [0] = [Wr^T | Wi^T] tile, [1] = [-Wi^T | Wr^T] tile
    # bias_ref: (1, tn)       [br - bi | br + bi] tile
    # out_ref : (tm, tn)      [real | imag] tile (lane-dense)
    # acc_ref : (tm, tn) f32  accumulator, resident across the K grid axis
    k = pl.program_id(2)

    @pl.when(k == 0)
    def _():
        acc_ref[...] = jnp.zeros_like(acc_ref)

    acc_ref[...] += (
        jnp.dot(x_ref[0], w_ref[0], preferred_element_type=jnp.float32)
        + jnp.dot(x_ref[1], w_ref[1], preferred_element_type=jnp.float32)
    )

    @pl.when(k == pl.num_programs(2) - 1)
    def _():
        out_ref[...] = (acc_ref[...] + bias_ref[...]).astype(out_ref.dtype)


def _round_up(v, m):
    return ((v + m - 1) // m) * m


def _pick_k_tile(k):
    # Contraction-axis tile: multiple of 128 (activation lane width) or full dim.
    for t in (512, 256, 128):
        if k > t and k % t == 0:
            return t
    return k


def _pick_n_tile(n2):
    # Lane tile over the fused 2*out_features axis: multiple of 128 or full dim.
    if n2 <= 1024:
        return n2
    for t in (512, 256, 128):
        if n2 % t == 0:
            return t
    return n2


def complex_linear(x, rfc_weight, ifc_weight, rfc_bias=None, ifc_bias=None):
    """ComplexLinear forward.

    x          : complex64 array (..., in_features)
    rfc_weight : (out_features, in_features) float32  (nn.Linear layout)
    ifc_weight : (out_features, in_features) float32
    rfc_bias   : (out_features,) float32 or None
    ifc_bias   : (out_features,) float32 or None
    returns complex64 array (..., out_features)
    """
    *batch_shape, in_f = x.shape
    out_f = rfc_weight.shape[0]
    m = int(math.prod(batch_shape)) if batch_shape else 1

    a = jnp.real(x).astype(jnp.float32).reshape(m, in_f)
    b = jnp.imag(x).astype(jnp.float32).reshape(m, in_f)
    xs = jnp.stack([a, b], axis=0)                       # (2, M, K)

    wr_t = rfc_weight.astype(jnp.float32).T              # (K, N)
    wi_t = ifc_weight.astype(jnp.float32).T              # (K, N)
    w_top = jnp.concatenate([wr_t, wi_t], axis=1)        # multiplies real rows
    w_bot = jnp.concatenate([-wi_t, wr_t], axis=1)       # multiplies imag rows
    ws = jnp.stack([w_top, w_bot], axis=0)               # (2, K, 2N)

    br = (jnp.zeros((out_f,), jnp.float32) if rfc_bias is None
          else rfc_bias.astype(jnp.float32))
    bi = (jnp.zeros((out_f,), jnp.float32) if ifc_bias is None
          else ifc_bias.astype(jnp.float32))
    bias = jnp.concatenate([br - bi, br + bi]).reshape(1, 2 * out_f)

    # Tile selection: row padding keeps every block in range; sizes keep the
    # double-buffered working set well under scoped VMEM on v5e/v6e/v7x.
    n2 = 2 * out_f
    m_pad = _round_up(max(m, 1), 8)
    tm = min(128, m_pad)
    m_pad = _round_up(m_pad, tm)
    tk = _pick_k_tile(in_f)
    tn = _pick_n_tile(n2)

    if m_pad != m:
        xs = jnp.pad(xs, ((0, 0), (0, m_pad - m), (0, 0)))

    grid = (m_pad // tm, n2 // tn, in_f // tk)

    flops = 2 * m * (2 * in_f) * n2
    bytes_accessed = 4 * (xs.size + ws.size + bias.size + m_pad * n2)

    out = pl.pallas_call(
        _complex_linear_kernel,
        out_shape=jax.ShapeDtypeStruct((m_pad, n2), jnp.float32),
        grid_spec=pltpu.PrefetchScalarGridSpec(
            num_scalar_prefetch=0,
            grid=grid,
            in_specs=[
                pl.BlockSpec((2, tm, tk), lambda i, j, k: (0, i, k)),
                pl.BlockSpec((2, tk, tn), lambda i, j, k: (0, k, j)),
                pl.BlockSpec((1, tn), lambda i, j, k: (0, j)),
            ],
            out_specs=pl.BlockSpec((tm, tn), lambda i, j, k: (i, j)),
            scratch_shapes=[pltpu.VMEM((tm, tn), jnp.float32)],
        ),
        compiler_params=pltpu.CompilerParams(
            dimension_semantics=("parallel", "parallel", "arbitrary"),
        ),
        cost_estimate=pl.CostEstimate(
            flops=flops, transcendentals=0, bytes_accessed=bytes_accessed),
    )(xs, ws, bias)

    out = out[:m]
    res = jax.lax.complex(out[:, :out_f], out[:, out_f:])
    return res.reshape(*batch_shape, out_f).astype(jnp.complex64)


def _reference(x, wr, wi, br, bi):
    hp = jax.lax.Precision.HIGHEST
    rfc = lambda t: jnp.dot(t, wr.T, precision=hp) + br
    ifc = lambda t: jnp.dot(t, wi.T, precision=hp) + bi
    return ((rfc(jnp.real(x)) - ifc(jnp.imag(x)))
            + 1j * (rfc(jnp.imag(x)) + ifc(jnp.real(x)))).astype(jnp.complex64)


if __name__ == "__main__":
    def run_case(batch, seq, in_f, out_f, case_idx):
        key = jax.random.fold_in(jax.random.PRNGKey(0), case_idx)
        keys = jax.random.split(key, 6)
        xr = jax.random.normal(keys[0], (batch, seq, in_f), jnp.float32)
        xi = jax.random.normal(keys[1], (batch, seq, in_f), jnp.float32)
        x = jax.lax.complex(xr, xi)                        # complex64
        wr = 0.1 * jax.random.normal(keys[2], (out_f, in_f), jnp.float32)
        wi = 0.1 * jax.random.normal(keys[3], (out_f, in_f), jnp.float32)
        br = 0.1 * jax.random.normal(keys[4], (out_f,), jnp.float32)
        bi = 0.1 * jax.random.normal(keys[5], (out_f,), jnp.float32)

        out = complex_linear(x, wr, wi, br, bi)
        jax.block_until_ready(out)

        ref = _reference(x, wr, wi, br, bi)
        assert out.shape == (batch, seq, out_f)
        assert out.dtype == jnp.complex64
        assert jnp.allclose(out, ref, atol=5e-3, rtol=5e-3), (
            f"mismatch: max err {jnp.max(jnp.abs(out - ref))}")

    # Small shape implied by the module spec (single-tile path).
    run_case(batch=2, seq=8, in_f=32, out_f=32, case_idx=0)
    # Slightly larger shape: exercises row padding, the parallel row grid and
    # the K-reduction accumulator (grid = (2, 1, 2)).
    run_case(batch=2, seq=96, in_f=256, out_f=128, case_idx=1)

    print("KERNEL_OK")
</pallas_src>

<mosaic_0001>
module attributes {stable_mosaic.version = 11 : i64} {
  func.func @_complex_linear_kernel(%arg0: i32, %arg1: i32, %arg2: i32, %arg3: memref<2x16x32xf32, #tpu.memory_space<vmem>>, %arg4: memref<2x32x64xf32, #tpu.memory_space<vmem>>, %arg5: memref<1x64xf32, #tpu.memory_space<vmem>>, %arg6: memref<16x64xf32, #tpu.memory_space<vmem>>, %arg7: memref<16x64xf32, #tpu.memory_space<vmem>>) attributes {dimension_semantics = [#tpu.dimension_semantics<parallel>, #tpu.dimension_semantics<parallel>, #tpu.dimension_semantics<arbitrary>], iteration_bounds = array<i64: 1, 1, 1>, scalar_prefetch = 0 : i64, scratch_operands = 1 : i64, tpu.core_type = #tpu.core_type<tc>, window_params = [{transform_indices = @transform_0, window_bounds = array<i64: 2, 16, 32>}, {transform_indices = @transform_1, window_bounds = array<i64: 2, 32, 64>}, {transform_indices = @transform_2, window_bounds = array<i64: 1, 64>}, {transform_indices = @transform_3, window_bounds = array<i64: 16, 64>}]} {
    %c0_i32 = arith.constant 0 : i32
    %0 = arith.cmpi eq, %arg2, %c0_i32 : i32
    %1 = arith.extui %0 : i1 to i32
    %c0_i32_0 = arith.constant 0 : i32
    %2 = arith.cmpi ne, %1, %c0_i32_0 : i32
    scf.if %2 {
      %cst_18 = arith.constant 0.000000e+00 : f32
      %20 = vector.broadcast %cst_18 : f32 to vector<16x64xf32>
      %c0_19 = arith.constant 0 : index
      %c0_20 = arith.constant 0 : index
      %21 = vector.load %arg7[%c0_19, %c0_20] : memref<16x64xf32, #tpu.memory_space<vmem>>, vector<16x64xf32>
      tpu.vector_store %arg7[%c0_19, %c0_20], %20 {strides = array<i32>} : memref<16x64xf32, #tpu.memory_space<vmem>>, vector<16x64xf32>,
    } else {
    }
    %c0 = arith.constant 0 : index
    %c0_1 = arith.constant 0 : index
    %3 = vector.load %arg7[%c0, %c0_1] : memref<16x64xf32, #tpu.memory_space<vmem>>, vector<16x64xf32>
    %c0_2 = arith.constant 0 : index
    %c0_3 = arith.constant 0 : index
    %c0_4 = arith.constant 0 : index
    %4 = vector.load %arg3[%c0_2, %c0_3, %c0_4] : memref<2x16x32xf32, #tpu.memory_space<vmem>>, vector<1x16x32xf32>
    %5 = vector.shape_cast %4 : vector<1x16x32xf32> to vector<16x32xf32>
    %c0_5 = arith.constant 0 : index
    %c0_6 = arith.constant 0 : index
    %c0_7 = arith.constant 0 : index
    %6 = vector.load %arg4[%c0_5, %c0_6, %c0_7] : memref<2x32x64xf32, #tpu.memory_space<vmem>>, vector<1x32x64xf32>
    %7 = vector.shape_cast %6 : vector<1x32x64xf32> to vector<32x64xf32>
    %cst = arith.constant dense<0.000000e+00> : vector<16x64xf32>
    %8 = tpu.matmul %5, %7, %cst {dimension_numbers = #tpu.dot_dimension_numbers<[1], [0], [0], [1], [0, 0, 1, 1], [], []>} : vector<16x32xf32>, vector<32x64xf32>, vector<16x64xf32> -> vector<16x64xf32>
    %c1 = arith.constant 1 : index
    %c0_8 = arith.constant 0 : index
    %c0_9 = arith.constant 0 : index
    %9 = vector.load %arg3[%c1, %c0_8, %c0_9] : memref<2x16x32xf32, #tpu.memory_space<vmem>>, vector<1x16x32xf32>
    %10 = vector.shape_cast %9 : vector<1x16x32xf32> to vector<16x32xf32>
    %c1_10 = arith.constant 1 : index
    %c0_11 = arith.constant 0 : index
    %c0_12 = arith.constant 0 : index
    %11 = vector.load %arg4[%c1_10, %c0_11, %c0_12] : memref<2x32x64xf32, #tpu.memory_space<vmem>>, vector<1x32x64xf32>
    %12 = vector.shape_cast %11 : vector<1x32x64xf32> to vector<32x64xf32>
    %cst_13 = arith.constant dense<0.000000e+00> : vector<16x64xf32>
    %13 = tpu.matmul %10, %12, %cst_13 {dimension_numbers = #tpu.dot_dimension_numbers<[1], [0], [0], [1], [0, 0, 1, 1], [], []>} : vector<16x32xf32>, vector<32x64xf32>, vector<16x64xf32> -> vector<16x64xf32>
    %14 = arith.addf %8, %13 : vector<16x64xf32>
    %15 = arith.addf %3, %14 : vector<16x64xf32>
    %c0_14 = arith.constant 0 : index
    %c0_15 = arith.constant 0 : index
    %16 = vector.load %arg7[%c0_14, %c0_15] : memref<16x64xf32, #tpu.memory_space<vmem>>, vector<16x64xf32>
    tpu.vector_store %arg7[%c0_14, %c0_15], %15 {strides = array<i32>} : memref<16x64xf32, #tpu.memory_space<vmem>>, vector<16x64xf32>,
    %c0_i32_16 = arith.constant 0 : i32
    %17 = arith.cmpi eq, %arg2, %c0_i32_16 : i32
    %18 = arith.extui %17 : i1 to i32
    %c0_i32_17 = arith.constant 0 : i32
    %19 = arith.cmpi ne, %18, %c0_i32_17 : i32
    scf.if %19 {
      %c0_18 = arith.constant 0 : index
      %c0_19 = arith.constant 0 : index
      %20 = vector.load %arg7[%c0_18, %c0_19] : memref<16x64xf32, #tpu.memory_space<vmem>>, vector<16x64xf32>
      %c0_20 = arith.constant 0 : index
      %c0_21 = arith.constant 0 : index
      %21 = vector.load %arg5[%c0_20, %c0_21] : memref<1x64xf32, #tpu.memory_space<vmem>>, vector<1x64xf32>
      %22 = vector.broadcast %21 : vector<1x64xf32> to vector<16x64xf32>
      %23 = arith.addf %20, %22 : vector<16x64xf32>
      %c0_22 = arith.constant 0 : index
      %c0_23 = arith.constant 0 : index
      %24 = vector.load %arg6[%c0_22, %c0_23] : memref<16x64xf32, #tpu.memory_space<vmem>>, vector<16x64xf32>
      tpu.vector_store %arg6[%c0_22, %c0_23], %23 {strides = array<i32>} : memref<16x64xf32, #tpu.memory_space<vmem>>, vector<16x64xf32>,
    } else {
    }
    return
  }
  func.func @transform_0(%arg0: i32, %arg1: i32, %arg2: i32) -> (i32, i32, i32) {
    %c0_i32 = arith.constant 0 : i32
    %c0_i32_0 = arith.constant 0 : i32
    return %c0_i32, %arg0, %arg2 : i32, i32, i32
  }
  func.func @transform_1(%arg0: i32, %arg1: i32, %arg2: i32) -> (i32, i32, i32) {
    %c0_i32 = arith.constant 0 : i32
    %c0_i32_0 = arith.constant 0 : i32
    return %c0_i32, %arg2, %arg1 : i32, i32, i32
  }
  func.func @transform_2(%arg0: i32, %arg1: i32, %arg2: i32) -> (i32, i32) {
    %c0_i32 = arith.constant 0 : i32
    %c0_i32_0 = arith.constant 0 : i32
    return %c0_i32, %arg1 : i32, i32
  }
  func.func @transform_3(%arg0: i32, %arg1: i32, %arg2: i32) -> (i32, i32) {
    %c0_i32 = arith.constant 0 : i32
    return %arg0, %arg1 : i32, i32
  }
}

</mosaic_0001>

<llo_original>
// kernel: tpu_custom_call.1
$region0: #{tpu_custom_call.1}
  #allocation0 [shape = 'u32[]', space=smem, size = 0x4, offset = 0x4, fixed_abs, tag = 'smem constant byte address 0x4 - core index']
  #allocation1 [shape = 'u32[144,128]{1,0:T(1,128)}', space=vmem, size = 0x12000, scoped, tag = 'internal scratch']
  #allocation2 [shape = 'f32[16,64]{1,0:T(8,128)}', space=vmem, size = 0x2000, scoped, tag = 'scratch operand']
  %s0 = inlined_call_operand.hbm [shape: f32[2,16,32], index: 0, kind: input, shape index: {}]
  %s1 = inlined_call_operand.hbm [shape: f32[2,32,64], index: 1, kind: input, shape index: {}]
  %s2 = inlined_call_operand.vmem [shape: f32[1,64], index: 2, kind: input, shape index: {}]
  %s3 = inlined_call_operand.hbm [shape: f32[16,64], index: 3, kind: output, shape index: {}]
  %s4 = sld [smem:[#allocation0]]
  $region38: #{tpu_custom_call.1} parent=0
    _
  %s6 = ssub.s32 1, %s4
  %s7 = scalar_select 0, %s6, %s4
  $region1: #{tpu_custom_call.1} parent=0
    #allocation3 [shape = 'u8[16384]{0}', space=vmem, size = 0x4000, scoped, tag = 'input window, operand 0, single buffered']
    #allocation4 [shape = 's32[1]{0}', space=sflag, size = 0x4, scoped, tag = 'scoped memory for tpu_custom_call.1']
    #allocation5 [shape = 's32[1]{0}', space=sflag, size = 0x4, scoped, tag = 'scoped memory for tpu_custom_call.1']
    #allocation6 [shape = 'u8[32768]{0}', space=vmem, size = 0x8000, scoped, tag = 'input window, operand 1, single buffered']
    #allocation7 [shape = 's32[1]{0}', space=sflag, size = 0x4, scoped, tag = 'scoped memory for tpu_custom_call.1']
    #allocation8 [shape = 'u8[8192]{0}', space=vmem, size = 0x2000, scoped, tag = 'output window, operand 0, single buffered']
    %8 = vsyncpa [#allocation4], 0
    %9 = vsyncpa [#allocation7], 0
    %10 = vsyncpa [#allocation5], 0
    // Predicated region
    $region2: #{tpu_custom_call.1} parent=1 // pred_check
      _
    $region3: #{tpu_custom_call.1} parent=1 // pred_check_branch
      %12 = sbr.rel (0) target = $region5
    $region4: #{tpu_custom_call.1} parent=1 // pred_region
      %s14 = ssub.s32 512, 512
      %15 = vsyncadd [#allocation4], %s14
      %s16 = sshll.u32 [#allocation3], 4
      %s17 = int_to_ptr.vmem [resolvable:$true] %s16
      %22 = dma.hbm_to_vmem [thread:$0]  %s0, 512, %s17, [#allocation4], 128, 128, 8
    $region5: #{tpu_custom_call.1} parent=1 // pred_fallthru
      _
    // Predicated region
    $region6: #{tpu_custom_call.1} parent=1 // pred_check
      _
    $region7: #{tpu_custom_call.1} parent=1 // pred_check_branch
      %24 = sbr.rel (0) target = $region9
    $region8: #{tpu_custom_call.1} parent=1 // pred_region
      %s26 = ssub.s32 1024, 1024
      %27 = vsyncadd [#allocation7], %s26
      %s28 = sshll.u32 [#allocation6], 4
      %s29 = int_to_ptr.vmem [resolvable:$true] %s28
      %34 = dma.hbm_to_vmem [thread:$0]  %s1, 1024, %s29, [#allocation7], 128, 128, 8
    $region9: #{tpu_custom_call.1} parent=1 // pred_fallthru
      _
    // Predicated region
    $region10: #{tpu_custom_call.1} parent=1 // pred_check
      _
    $region11: #{tpu_custom_call.1} parent=1 // pred_check_branch
      %36 = sbr.rel (0) target = $region13
    $region12: #{tpu_custom_call.1} parent=1 // pred_region
      _
    $region13: #{tpu_custom_call.1} parent=1 // pred_fallthru
      _
    // Predicated region
    $region14: #{tpu_custom_call.1} parent=1 // pred_check
      _
    $region15: #{tpu_custom_call.1} parent=1 // pred_check_branch
      %38 = sbr.rel (0) target = $region17
    $region16: #{tpu_custom_call.1} parent=1 // pred_region
      %39 = dma.done [#allocation4], 512
    $region17: #{tpu_custom_call.1} parent=1 // pred_fallthru
      _
    // Predicated region
    $region18: #{tpu_custom_call.1} parent=1 // pred_check
      _
    $region19: #{tpu_custom_call.1} parent=1 // pred_check_branch
      %41 = sbr.rel (0) target = $region21
    $region20: #{tpu_custom_call.1} parent=1 // pred_region
      %42 = dma.done [#allocation7], 1024
    $region21: #{tpu_custom_call.1} parent=1 // pred_fallthru
      _
    %p43 = scmp.eq.s32.totalorder 0, 0
    // Predicated region
    $region22: #{tpu_custom_call.1} parent=1 // pred_check
      %p44 = pneg %p43
    $region23: #{tpu_custom_call.1} parent=1 // pred_check_branch
      %46 = sbr.rel (%p44) target = $region25
    $region24: #{tpu_custom_call.1} parent=1 // pred_region
      %vm47 = vcmask 523264
      %48 = vst.msk [vmem:[#allocation2] sm:$0xff] %vm47, 0.0
      %49 = vst.msk [vmem:[#allocation2 + $0x8] sm:$0xff] %vm47, 0.0
    $region25: #{tpu_custom_call.1} parent=1 // pred_fallthru
      _
    %v50 = vld [vmem:[#allocation2] sm:$0xff]
    %v51 = vld [vmem:[#allocation2 + $0x8] sm:$0xff]
    %v52 = vld [vmem:[#allocation3] sm:$0xff]
    %v53 = vld [vmem:[#allocation3 + $0x8] sm:$0xff]
    %v54 = vld [vmem:[#allocation6] sm:$0xff]
    %v55 = vld [vmem:[#allocation6 + $0x8] sm:$0xff]
    %v56 = vld [vmem:[#allocation6 + $0x10] sm:$0xff]
    %v57 = vld [vmem:[#allocation6 + $0x18] sm:$0xff]
    %s58 = scalar_lea.vmem [#allocation3], 16
    %v59 = vld [vmem:[%s58] sm:$0xff]
    %v60 = vld [vmem:[%s58 + $0x8] sm:$0xff]
    %s61 = scalar_lea.vmem [#allocation6], 32
    %v62 = vld [vmem:[%s61] sm:$0xff]
    %v63 = vld [vmem:[%s61 + $0x8] sm:$0xff]
    %v64 = vld [vmem:[%s61 + $0x10] sm:$0xff]
    %v65 = vld [vmem:[%s61 + $0x18] sm:$0xff]
    %vm66 = vcmask 261120
    %v68 = vsel %vm66, %v59, 0
    %v71 = vsel %vm66, %v60, 0
    %73 = vmatprep.subr.mxu0 0.0
    %74 = vmatpush1.msra.mxu0 %v62
    %75 = vmatprep.subr.mxu0 0.0
    %76 = vmatpush1.msra.mxu0 %v63
    %77 = vmatprep.subr.mxu0 0.0
    %78 = vmatpush1.msra.mxu0 %v64
    %79 = vmatprep.subr.mxu0 0.0
    %80 = vmatpush1.msra.mxu0 %v65
    %81 = vmatprep.subr.mxu0 0.0
    %82 = vmatpush1.msra.mxu0 0.0
    %83 = vmatprep.subr.mxu0 0.0
    %84 = vmatpush1.msra.mxu0 0.0
    %85 = vmatprep.subr.mxu0 0.0
    %86 = vmatpush1.msra.mxu0 0.0
    %87 = vmatprep.subr.mxu0 0.0
    %88 = vmatpush1.msra.mxu0 0.0
    %89 = vmatprep.subr.mxu0 0.0
    %90 = vmatpush1.msra.mxu0 0.0
    %91 = vmatprep.subr.mxu0 0.0
    %92 = vmatpush1.msra.mxu0 0.0
    %93 = vmatprep.subr.mxu0 0.0
    %94 = vmatpush1.msra.mxu0 0.0
    %95 = vmatprep.subr.mxu0 0.0
    %96 = vmatpush1.msra.mxu0 0.0
    %97 = vmatprep.subr.mxu0 0.0
    %98 = vmatpush1.msra.mxu0 0.0
    %99 = vmatprep.subr.mxu0 0.0
    %100 = vmatpush1.msra.mxu0 0.0
    %101 = vmatprep.subr.mxu0 0.0
    %102 = vmatpush1.msra.mxu0 0.0
    %103 = vmatprep.subr.mxu0 0.0
    %104 = vmatpush1.msra.mxu0 0.0
    %105 = vmatprep.subr.mxu0 0.0
    %106 = vmatpush1.msra.mxu0 0.0
    %107 = vmatprep.subr.mxu0 0.0
    %108 = vmatpush1.msra.mxu0 0.0
    %109 = vmatprep.subr.mxu0 0.0
    %110 = vmatpush1.msra.mxu0 0.0
    %111 = vmatprep.subr.mxu0 0.0
    %112 = vmatpush1.msra.mxu0 0.0
    %113 = vmatprep.subr.mxu0 0.0
    %114 = vmatpush1.msra.mxu0 0.0
    %115 = vmatprep.subr.mxu0 0.0
    %116 = vmatpush1.msra.mxu0 0.0
    %117 = vmatprep.subr.mxu0 0.0
    %118 = vmatpush1.msra.mxu0 0.0
    %119 = vmatprep.subr.mxu0 0.0
    %120 = vmatpush1.msra.mxu0 0.0
    %121 = vmatprep.subr.mxu0 0.0
    %122 = vmatpush1.msra.mxu0 0.0
    %123 = vmatprep.subr.mxu0 0.0
    %124 = vmatpush1.msra.mxu0 0.0
    %125 = vmatprep.subr.mxu0 0.0
    %126 = vmatpush1.msra.mxu0 0.0
    %127 = vmatprep.subr.mxu0 0.0
    %128 = vmatpush1.msra.mxu0 0.0
    %129 = vmatprep.subr.mxu0 0.0
    %130 = vmatpush1.msra.mxu0 0.0
    %131 = vmatprep.subr.mxu0 0.0
    %132 = vmatpush1.msra.mxu0 0.0
    %133 = vmatprep.subr.mxu0 0.0
    %134 = vmatpush1.msra.mxu0 0.0
    %135 = vmatprep.subr.mxu0 0.0
    %136 = vmatpush1.msra.mxu0 0.0
    %137 = vmatprep.mubr.f32.mxu0 0.0
    %138 = vmatmul.mubr.f32.gmra.mrb[0].mxu0 %v68
    %v139 = vpop.f32.mrb[0].mxu0
    %v140 = vadd.f32 0.0, %v139
    %v141 = vpop.f32.mrb[0].mxu0
    %142 = vmatprep.mubr.f32.mxu0 0.0
    %143 = vmatmul.mubr.f32.gmra.mrb[0].mxu0 %v71
    %v144 = vpop.f32.mrb[0].mxu0
    %v145 = vadd.f32 0.0, %v144
    %v146 = vpop.f32.mrb[0].mxu0
    %147 = vdwg.mxu0
    %v149 = vsel %vm66, %v52, 0
    %v152 = vsel %vm66, %v53, 0
    %154 = vmatprep.subr.mxu0 0.0
    %155 = vmatpush1.msra.mxu0 %v54
    %156 = vmatprep.subr.mxu0 0.0
    %157 = vmatpush1.msra.mxu0 %v55
    %158 = vmatprep.subr.mxu0 0.0
    %159 = vmatpush1.msra.mxu0 %v56
    %160 = vmatprep.subr.mxu0 0.0
    %161 = vmatpush1.msra.mxu0 %v57
    %162 = vmatprep.subr.mxu0 0.0
    %163 = vmatpush1.msra.mxu0 0.0
    %164 = vmatprep.subr.mxu0 0.0
    %165 = vmatpush1.msra.mxu0 0.0
    %166 = vmatprep.subr.mxu0 0.0
    %167 = vmatpush1.msra.mxu0 0.0
    %168 = vmatprep.subr.mxu0 0.0
    %169 = vmatpush1.msra.mxu0 0.0
    %170 = vmatprep.subr.mxu0 0.0
    %171 = vmatpush1.msra.mxu0 0.0
    %172 = vmatprep.subr.mxu0 0.0
    %173 = vmatpush1.msra.mxu0 0.0
    %174 = vmatprep.subr.mxu0 0.0
    %175 = vmatpush1.msra.mxu0 0.0
    %176 = vmatprep.subr.mxu0 0.0
    %177 = vmatpush1.msra.mxu0 0.0
    %178 = vmatprep.subr.mxu0 0.0
    %179 = vmatpush1.msra.mxu0 0.0
    %180 = vmatprep.subr.mxu0 0.0
    %181 = vmatpush1.msra.mxu0 0.0
    %182 = vmatprep.subr.mxu0 0.0
    %183 = vmatpush1.msra.mxu0 0.0
    %184 = vmatprep.subr.mxu0 0.0
    %185 = vmatpush1.msra.mxu0 0.0
    %186 = vmatprep.subr.mxu0 0.0
    %187 = vmatpush1.msra.mxu0 0.0
    %188 = vmatprep.subr.mxu0 0.0
    %189 = vmatpush1.msra.mxu0 0.0
    %190 = vmatprep.subr.mxu0 0.0
    %191 = vmatpush1.msra.mxu0 0.0
    %192 = vmatprep.subr.mxu0 0.0
    %193 = vmatpush1.msra.mxu0 0.0
    %194 = vmatprep.subr.mxu0 0.0
    %195 = vmatpush1.msra.mxu0 0.0
    %196 = vmatprep.subr.mxu0 0.0
    %197 = vmatpush1.msra.mxu0 0.0
    %198 = vmatprep.subr.mxu0 0.0
    %199 = vmatpush1.msra.mxu0 0.0
    %200 = vmatprep.subr.mxu0 0.0
    %201 = vmatpush1.msra.mxu0 0.0
    %202 = vmatprep.subr.mxu0 0.0
    %203 = vmatpush1.msra.mxu0 0.0
    %204 = vmatprep.subr.mxu0 0.0
    %205 = vmatpush1.msra.mxu0 0.0
    %206 = vmatprep.subr.mxu0 0.0
    %207 = vmatpush1.msra.mxu0 0.0
    %208 = vmatprep.subr.mxu0 0.0
    %209 = vmatpush1.msra.mxu0 0.0
    %210 = vmatprep.subr.mxu0 0.0
    %211 = vmatpush1.msra.mxu0 0.0
    %212 = vmatprep.subr.mxu0 0.0
    %213 = vmatpush1.msra.mxu0 0.0
    %214 = vmatprep.subr.mxu0 0.0
    %215 = vmatpush1.msra.mxu0 0.0
    %216 = vmatprep.subr.mxu0 0.0
    %217 = vmatpush1.msra.mxu0 0.0
    %218 = vmatprep.mubr.f32.mxu0 0.0
    %219 = vmatmul.mubr.f32.gmra.mrb[0].mxu0 %v149
    %v220 = vpop.f32.mrb[0].mxu0
    %v221 = vadd.f32 %v140, %v220
    %v222 = vpop.f32.mrb[0].mxu0
    %223 = vmatprep.mubr.f32.mxu0 0.0
    %224 = vmatmul.mubr.f32.gmra.mrb[0].mxu0 %v152
    %v225 = vpop.f32.mrb[0].mxu0
    %v226 = vadd.f32 %v145, %v225
    %v227 = vpop.f32.mrb[0].mxu0
    %228 = vdwg.mxu0
    %v229 = vadd.f32 %v50, %v221
    %v230 = vadd.f32 %v51, %v226
    %vm231 = vcmask 523264
    %232 = vst.msk [vmem:[#allocation2] sm:$0xff] %vm231, %v229
    %233 = vst.msk [vmem:[#allocation2 + $0x8] sm:$0xff] %vm231, %v230
    // Predicated region
    $region26: #{tpu_custom_call.1} parent=1 // pred_check
      %p234 = pneg %p43
    $region27: #{tpu_custom_call.1} parent=1 // pred_check_branch
      %236 = sbr.rel (%p234) target = $region29
    $region28: #{tpu_custom_call.1} parent=1 // pred_region
      %v237 = vld [vmem:[#allocation2] sm:$0xff]
      %v238 = vld [vmem:[#allocation2 + $0x8] sm:$0xff]
      %v239 = vld [vmem:[%s2] sm:$0x1]
      %v241 = vlaneseq
      %v242 = vshrl.u32 %v241, 7
      %v243 = vsub.s32 0, %v242
      %v244 = vrot.slane %v239, %v243
      %v246 = vadd.f32 %v237, %v244
      %v247 = vadd.f32 %v238, %v244
      %248 = vst.msk [vmem:[#allocation8] sm:$0xff] %vm231, %v246
      %249 = vst.msk [vmem:[#allocation8 + $0x8] sm:$0xff] %vm231, %v247
    $region29: #{tpu_custom_call.1} parent=1 // pred_fallthru
      _
    // Predicated region
    $region30: #{tpu_custom_call.1} parent=1 // pred_check
      _
    $region31: #{tpu_custom_call.1} parent=1 // pred_check_branch
      %251 = sbr.rel (0) target = $region33
    $region32: #{tpu_custom_call.1} parent=1 // pred_region
      %s253 = ssub.s32 256, 256
      %254 = vsyncadd [#allocation5], %s253
      %s255 = sshll.u32 [#allocation8], 4
      %s256 = int_to_ptr.vmem [resolvable:$true] %s255
      %261 = dma.vmem_to_hbm [thread:$0]  %s256, 256, %s3, [#allocation5], 128, 128, 8
    $region33: #{tpu_custom_call.1} parent=1 // pred_fallthru
      _
    // Predicated region
    $region34: #{tpu_custom_call.1} parent=1 // pred_check
      _
    $region35: #{tpu_custom_call.1} parent=1 // pred_check_branch
      %263 = sbr.rel (0) target = $region37
    $region36: #{tpu_custom_call.1} parent=1 // pred_region
      %264 = dma.done [#allocation5], 256
    $region37: #{tpu_custom_call.1} parent=1 // pred_fallthru
      _
    %265 = vsyncpa [#allocation4], 1
    %266 = vsyncpa [#allocation7], 1
    %267 = vsyncpa [#allocation5], 1

</llo_original>
